<compile_context>
chip_gen: v7x
topology: tpu7x:2x2x1
jax: 0.10.0
libtpu: 0.0.40
codegen_flags: <defaults>
</compile_context>

<pallas_src>
import functools

import jax
import jax.numpy as jnp
import numpy as np
from jax.experimental import pallas as pl
from jax.experimental.pallas import tpu as pltpu

LANES = 128          # lane-dense output / last-layer width
NEG_PAD = -1e30      # bias padding for unused action lanes (never the max)


def _round_up(x, m):
    return ((x + m - 1) // m) * m


# ---------------------------------------------------------------------------
# Pallas kernel: fused 3-layer MLP Q-net + greedy argmax + eps-greedy select
# ---------------------------------------------------------------------------
def ddqn_act_kernel(x_ref, w1_ref, b1_ref, w2_ref, b2_ref, w3_ref, b3_ref,
                    rand_ref, out_ref, *, dim_action):
    # x   : (TB, S)  f32  (cast to bf16 in-kernel; VPU filler, free)
    # w1  : (S, Hp)  bf16     b1: (1, Hp)  f32   (padded hidden lanes are zero)
    # w2  : (Hp, Hp) bf16     b2: (1, Hp)  f32
    # w3  : (Hp,128) bf16     b3: (1, 128) f32   (lanes >= A biased to NEG_PAD)
    # rand: (TB, 1)  int32  -- -1 => exploit (greedy), k in [0,A) => explore k
    # out : (TB, 128) bf16  -- lanes [0,A): q, lane A: greedy, lane A+1: chosen

    # MLP: matmuls in bf16 on the MXU, accumulate + elementwise in f32 (VPU).
    x = x_ref[...].astype(jnp.bfloat16)
    h1 = jnp.dot(x, w1_ref[...],
                 preferred_element_type=jnp.float32) + b1_ref[...]
    h1 = jnp.maximum(h1, 0.0).astype(jnp.bfloat16)

    h2 = jnp.dot(h1, w2_ref[...],
                 preferred_element_type=jnp.float32) + b2_ref[...]
    h2 = jnp.maximum(h2, 0.0).astype(jnp.bfloat16)

    q = jnp.dot(h2, w3_ref[...],
                preferred_element_type=jnp.float32) + b3_ref[...]   # (TB, 128)

    # torch.max(x, 1)[1]: index of first maximum over the action lanes.
    lane = jax.lax.broadcasted_iota(jnp.int32, q.shape, 1)
    m = jnp.max(q, axis=-1, keepdims=True)
    greedy = jnp.min(jnp.where(q == m, lane, q.shape[-1]),
                     axis=-1, keepdims=True)                        # (TB,1) i32

    # Epsilon-greedy: the explore/exploit decision + random action were drawn
    # on device in the wrapper; -1 means "use the greedy action".
    rnd = rand_ref[...]                                             # (TB,1) i32
    chosen = jnp.where(rnd < 0, greedy, rnd)

    # Pack q + greedy + chosen into one lane-dense bf16 slab (single unmasked
    # store).  Action indices are exact in bf16 (< 256, asserted in wrapper).
    out = jnp.where(lane == dim_action, greedy.astype(jnp.float32),
          jnp.where(lane == dim_action + 1, chosen.astype(jnp.float32), q))
    out_ref[...] = out.astype(out_ref.dtype)


# ---------------------------------------------------------------------------
# Jitted wrapper: device-side RNG, batch grid, output unpacking.
# ---------------------------------------------------------------------------
@functools.partial(jax.jit, static_argnames=("dim_action",))
def _ddqn_act(state, key, eps, w1, b1, w2, b2, w3p, b3p, *, dim_action):
    B, S = state.shape
    Hp = w1.shape[1]

    # Batch tiling: multiple of 8 sublanes, up to 512 rows per tile; when the
    # batch is large keep >=2 grid steps so v7x can shard across both TCs.
    b8 = _round_up(B, 8)
    if b8 <= 16:
        tb = b8
    else:
        half = ((b8 + 15) // 16) * 8          # round_up(b8/2, 8)
        tb = min(512, half)
    b_pad = _round_up(b8, tb)

    x = state
    if b_pad != B:
        x = jnp.pad(x, ((0, b_pad - B), (0, 0)))

    # RNG on device (jax.random: works on TPU and in interpret mode; the
    # pltpu.prng_* primitives have no CPU/interpret lowering).
    k_explore, k_action, new_key = jax.random.split(key, 3)
    u = jax.random.uniform(k_explore, (b_pad, 1), jnp.float32)
    rand_act = jax.random.randint(k_action, (b_pad, 1), 0, dim_action,
                                  jnp.int32)
    # Original DDQN branch: rand <= epsilon -> greedy (exploit), else random.
    rand_or_neg = jnp.where(u <= eps, jnp.int32(-1), rand_act)

    kernel = functools.partial(ddqn_act_kernel, dim_action=dim_action)

    flops = 2 * b_pad * (S * Hp + Hp * Hp + Hp * LANES)
    bytes_accessed = (x.size * 4 + rand_or_neg.size * 4
                      + w1.size * 2 + w2.size * 2 + w3p.size * 2
                      + b1.size * 4 + b2.size * 4 + b3p.size * 4
                      + b_pad * LANES * 2)

    out = pl.pallas_call(
        kernel,
        out_shape=jax.ShapeDtypeStruct((b_pad, LANES), jnp.bfloat16),
        grid=(b_pad // tb,),
        in_specs=[
            pl.BlockSpec((tb, S), lambda i: (i, 0)),          # state tile (f32)
            pl.BlockSpec((S, Hp), lambda i: (0, 0)),          # w1 (resident)
            pl.BlockSpec((1, Hp), lambda i: (0, 0)),          # b1
            pl.BlockSpec((Hp, Hp), lambda i: (0, 0)),         # w2
            pl.BlockSpec((1, Hp), lambda i: (0, 0)),          # b2
            pl.BlockSpec((Hp, LANES), lambda i: (0, 0)),      # w3 (lane-padded)
            pl.BlockSpec((1, LANES), lambda i: (0, 0)),       # b3 (lane-padded)
            pl.BlockSpec((tb, 1), lambda i: (i, 0)),          # explore/rand col
        ],
        out_specs=pl.BlockSpec((tb, LANES), lambda i: (i, 0)),
        compiler_params=pltpu.CompilerParams(
            dimension_semantics=("parallel",)),
        cost_estimate=pl.CostEstimate(flops=flops, transcendentals=0,
                                      bytes_accessed=bytes_accessed),
    )(x, w1, b1, w2, b2, w3p, b3p, rand_or_neg)

    q = out[:B, :dim_action].astype(jnp.float32)
    greedy = out[:B, dim_action].astype(jnp.int32)
    chosen = out[:B, dim_action + 1].astype(jnp.int32)
    return q, greedy, chosen, new_key


# ---------------------------------------------------------------------------
# DDQN agent wrapper (forward-pass semantics of the PyTorch module).
# ---------------------------------------------------------------------------
class DDQNPallas:
    def __init__(self, state_dim, hidden_dim, dim_action=4, gamma=0.99,
                 epsilon=1.0, seed=0, key=None):
        assert dim_action + 2 <= LANES, "packed slab needs dim_action+2 lanes"
        assert dim_action < 256, "action indices must be exact in bf16"
        self.dim_action = dim_action
        self.gamma = gamma
        self.epsilon = epsilon
        # epsilon lives on device; no per-call host->device copy.
        self._eps_dev = jnp.float32(epsilon)
        # PRNG key threaded through the jitted call (stays on device).
        self._key = jax.random.PRNGKey(seed)

        key = jax.random.PRNGKey(0) if key is None else key
        ks = jax.random.split(key, 6)

        # Synthetic eval_net params. PyTorch Linear weights are (out, in);
        # stored transposed -> (in, out). Matmul operands bf16, biases f32.
        def init(k, shape, fan_in):
            return jax.random.normal(k, shape, jnp.float32) / np.sqrt(fan_in)

        H, Hp = hidden_dim, _round_up(max(hidden_dim, 128), 128)
        A = dim_action
        w1 = init(ks[0], (state_dim, H), state_dim)
        b1 = init(ks[1], (1, H), state_dim)
        w2 = init(ks[2], (H, H), H)
        b2 = init(ks[3], (1, H), H)
        w3 = init(ks[4], (H, A), H)
        b3 = init(ks[5], (1, A), H)

        # Zero-pad the hidden dim to a multiple of 128 (lane-dense h1/h2,
        # MXU-native K/N); lane-pad the last layer to 128 so the output slab
        # gets a single unmasked store.  Padded hidden lanes stay exactly 0
        # through ReLU, padded action lanes are biased to NEG_PAD (never max).
        self.w1 = jnp.zeros((state_dim, Hp), jnp.bfloat16
                            ).at[:, :H].set(w1.astype(jnp.bfloat16))
        self.b1 = jnp.zeros((1, Hp), jnp.float32).at[:, :H].set(b1)
        self.w2 = jnp.zeros((Hp, Hp), jnp.bfloat16
                            ).at[:H, :H].set(w2.astype(jnp.bfloat16))
        self.b2 = jnp.zeros((1, Hp), jnp.float32).at[:, :H].set(b2)
        self.w3p = jnp.zeros((Hp, LANES), jnp.bfloat16
                             ).at[:H, :A].set(w3.astype(jnp.bfloat16))
        self.b3p = jnp.full((1, LANES), NEG_PAD, jnp.float32).at[:, :A].set(b3)

    def q_forward(self, state, epsilon=None):
        """Fused Q-eval + argmax + epsilon-greedy. Returns
        (q_values (B,A), greedy (B,), chosen (B,)) — all device arrays."""
        eps = self._eps_dev if epsilon is None else jnp.float32(epsilon)
        q, greedy, chosen, self._key = _ddqn_act(
            state, self._key, eps, self.w1, self.b1, self.w2, self.b2,
            self.w3p, self.b3p, dim_action=self.dim_action)
        return q, greedy, chosen

    def forward_device(self, state, eval_tag=True):
        """Action selection with NO host sync (stays on device)."""
        _, greedy, chosen = self.q_forward(state)
        return chosen if eval_tag else greedy

    def forward(self, state, action_flag=None, eval_tag=True):
        """Mirrors DDQN.forward's `.item()` contract: returns a Python int.
        (Original semantics: eval_tag and rand <= epsilon -> greedy,
         eval_tag and rand > epsilon -> random action, else greedy.)"""
        return int(jax.device_get(self.forward_device(state, eval_tag))[0])

    # TODO(synk): DDQN.update() (Adam step, MSE loss backward, soft target
    # update every 10 steps) is training-loop glue, not a forward-pass kernel.


# ---------------------------------------------------------------------------
if __name__ == "__main__":
    B, S, H, A = 8, 16, 32, 4   # batch, state_dim, hidden, dim_action
    key = jax.random.PRNGKey(0)
    k_state, k_params = jax.random.split(key)

    agent = DDQNPallas(state_dim=S, hidden_dim=H, dim_action=A,
                       gamma=0.99, epsilon=1.0, key=k_params)
    state = jax.random.normal(k_state, (B, S), jnp.float32)

    # Batched Q-evaluation + greedy + epsilon-greedy action, all on TPU.
    q, greedy, chosen = agent.q_forward(state)
    q = jax.block_until_ready(q)
    greedy = jax.block_until_ready(greedy)
    chosen = jax.block_until_ready(chosen)

    # Reference in plain JAX with the same bf16 matmul / f32 accumulate path
    # (padded weights behave identically: padded hidden lanes stay zero).
    xb = state.astype(jnp.bfloat16)
    h1 = jnp.maximum(jnp.dot(xb, agent.w1, preferred_element_type=jnp.float32)
                     + agent.b1, 0.0)
    h2 = jnp.maximum(jnp.dot(h1.astype(jnp.bfloat16), agent.w2,
                             preferred_element_type=jnp.float32) + agent.b2, 0.0)
    q_ref = (jnp.dot(h2.astype(jnp.bfloat16), agent.w3p,
                     preferred_element_type=jnp.float32) + agent.b3p)[:, :A]

    # Kernel q is bf16-rounded on the way out -> loose tolerance.
    assert jnp.allclose(q, q_ref, atol=5e-2, rtol=5e-2), "q mismatch"
    # Greedy action must attain the (reference) row maximum.
    picked = q_ref[jnp.arange(B), greedy]
    assert bool(jnp.all(picked >= q_ref.max(axis=1) - 5e-2)), "argmax mismatch"
    # epsilon = 1.0 -> rand <= eps always -> chosen == greedy (original branch).
    assert jnp.array_equal(chosen, greedy), "eps=1.0 should always exploit"

    # epsilon = 0.0 -> random action path; must be a valid action index.
    _, _, chosen_rand = agent.q_forward(state, epsilon=0.0)
    chosen_rand = jax.block_until_ready(chosen_rand)
    assert bool(jnp.all((chosen_rand >= 0) & (chosen_rand < A)))

    # Device-only acting path (no host round trip).
    a_dev = jax.block_until_ready(agent.forward_device(state))
    assert a_dev.shape == (B,)

    # Original forward() contract (single state -> Python int).
    a0 = agent.forward(state[:1])
    assert 0 <= a0 < A

    print("KERNEL_OK")
</pallas_src>

<mosaic_0001>
module attributes {stable_mosaic.version = 11 : i64} {
  func.func @ddqn_act_kernel(%arg0: i32, %arg1: memref<8x16xf32, #tpu.memory_space<vmem>>, %arg2: memref<16x128xbf16, #tpu.memory_space<vmem>>, %arg3: memref<1x128xf32, #tpu.memory_space<vmem>>, %arg4: memref<128x128xbf16, #tpu.memory_space<vmem>>, %arg5: memref<1x128xf32, #tpu.memory_space<vmem>>, %arg6: memref<128x128xbf16, #tpu.memory_space<vmem>>, %arg7: memref<1x128xf32, #tpu.memory_space<vmem>>, %arg8: memref<8x1xi32, #tpu.memory_space<vmem>>, %arg9: memref<8x128xbf16, #tpu.memory_space<vmem>>) attributes {dimension_semantics = [#tpu.dimension_semantics<parallel>], iteration_bounds = array<i64: 1>, scalar_prefetch = 0 : i64, scratch_operands = 0 : i64, tpu.core_type = #tpu.core_type<tc>, window_params = [{transform_indices = @transform_0, window_bounds = array<i64: 8, 16>}, {pipeline_mode = #tpu.pipeline_mode<synchronous>, transform_indices = @transform_1, window_bounds = array<i64: 16, 128>}, {pipeline_mode = #tpu.pipeline_mode<synchronous>, transform_indices = @transform_2, window_bounds = array<i64: 1, 128>}, {pipeline_mode = #tpu.pipeline_mode<synchronous>, transform_indices = @transform_3, window_bounds = array<i64: 128, 128>}, {pipeline_mode = #tpu.pipeline_mode<synchronous>, transform_indices = @transform_4, window_bounds = array<i64: 1, 128>}, {pipeline_mode = #tpu.pipeline_mode<synchronous>, transform_indices = @transform_5, window_bounds = array<i64: 128, 128>}, {pipeline_mode = #tpu.pipeline_mode<synchronous>, transform_indices = @transform_6, window_bounds = array<i64: 1, 128>}, {transform_indices = @transform_7, window_bounds = array<i64: 8, 1>}, {transform_indices = @transform_8, window_bounds = array<i64: 8, 128>}]} {
    %c0 = arith.constant 0 : index
    %c0_0 = arith.constant 0 : index
    %0 = vector.load %arg1[%c0, %c0_0] : memref<8x16xf32, #tpu.memory_space<vmem>>, vector<8x16xf32>
    %1 = arith.truncf %0 : vector<8x16xf32> to vector<8x16xbf16>
    %c0_1 = arith.constant 0 : index
    %c0_2 = arith.constant 0 : index
    %2 = vector.load %arg2[%c0_1, %c0_2] : memref<16x128xbf16, #tpu.memory_space<vmem>>, vector<16x128xbf16>
    %cst = arith.constant dense<0.000000e+00> : vector<8x128xf32>
    %3 = tpu.matmul %1, %2, %cst {dimension_numbers = #tpu.dot_dimension_numbers<[1], [0], [0], [1], [0, 0, 1, 1], [], []>} : vector<8x16xbf16>, vector<16x128xbf16>, vector<8x128xf32> -> vector<8x128xf32>
    %c0_3 = arith.constant 0 : index
    %c0_4 = arith.constant 0 : index
    %4 = vector.load %arg3[%c0_3, %c0_4] : memref<1x128xf32, #tpu.memory_space<vmem>>, vector<1x128xf32>
    %5 = vector.broadcast %4 : vector<1x128xf32> to vector<8x128xf32>
    %6 = arith.addf %3, %5 : vector<8x128xf32>
    %cst_5 = arith.constant 0.000000e+00 : f32
    %7 = vector.broadcast %cst_5 : f32 to vector<8x128xf32>
    %8 = arith.maximumf %6, %7 : vector<8x128xf32>
    %9 = arith.truncf %8 : vector<8x128xf32> to vector<8x128xbf16>
    %c0_6 = arith.constant 0 : index
    %c0_7 = arith.constant 0 : index
    %10 = vector.load %arg4[%c0_6, %c0_7] : memref<128x128xbf16, #tpu.memory_space<vmem>>, vector<128x128xbf16>
    %cst_8 = arith.constant dense<0.000000e+00> : vector<8x128xf32>
    %11 = tpu.matmul %9, %10, %cst_8 {dimension_numbers = #tpu.dot_dimension_numbers<[1], [0], [0], [1], [0, 0, 1, 1], [], []>} : vector<8x128xbf16>, vector<128x128xbf16>, vector<8x128xf32> -> vector<8x128xf32>
    %c0_9 = arith.constant 0 : index
    %c0_10 = arith.constant 0 : index
    %12 = vector.load %arg5[%c0_9, %c0_10] : memref<1x128xf32, #tpu.memory_space<vmem>>, vector<1x128xf32>
    %13 = vector.broadcast %12 : vector<1x128xf32> to vector<8x128xf32>
    %14 = arith.addf %11, %13 : vector<8x128xf32>
    %cst_11 = arith.constant 0.000000e+00 : f32
    %15 = vector.broadcast %cst_11 : f32 to vector<8x128xf32>
    %16 = arith.maximumf %14, %15 : vector<8x128xf32>
    %17 = arith.truncf %16 : vector<8x128xf32> to vector<8x128xbf16>
    %c0_12 = arith.constant 0 : index
    %c0_13 = arith.constant 0 : index
    %18 = vector.load %arg6[%c0_12, %c0_13] : memref<128x128xbf16, #tpu.memory_space<vmem>>, vector<128x128xbf16>
    %cst_14 = arith.constant dense<0.000000e+00> : vector<8x128xf32>
    %19 = tpu.matmul %17, %18, %cst_14 {dimension_numbers = #tpu.dot_dimension_numbers<[1], [0], [0], [1], [0, 0, 1, 1], [], []>} : vector<8x128xbf16>, vector<128x128xbf16>, vector<8x128xf32> -> vector<8x128xf32>
    %c0_15 = arith.constant 0 : index
    %c0_16 = arith.constant 0 : index
    %20 = vector.load %arg7[%c0_15, %c0_16] : memref<1x128xf32, #tpu.memory_space<vmem>>, vector<1x128xf32>
    %21 = vector.broadcast %20 : vector<1x128xf32> to vector<8x128xf32>
    %22 = arith.addf %19, %21 : vector<8x128xf32>
    %23 = tpu.iota {dimensions = array<i32: 1>} : vector<8x128xi32>
    %cst_17 = arith.constant dense<0xFF800000> : vector<8xf32>
    %24 = vector.multi_reduction <maximumf>, %22, %cst_17 [1] : vector<8x128xf32> to vector<8xf32>
    %25 = vector.shape_cast %24 : vector<8xf32> to vector<8x1xf32>
    %26 = vector.broadcast %25 : vector<8x1xf32> to vector<8x128xf32>
    %27 = arith.cmpf oeq, %22, %26 : vector<8x128xf32>
    %c128_i32 = arith.constant 128 : i32
    %28 = vector.broadcast %c128_i32 : i32 to vector<8x128xi32>
    %29 = arith.select %27, %23, %28 : vector<8x128xi1>, vector<8x128xi32>
    %cst_18 = arith.constant dense<2147483647> : vector<8xi32>
    %30 = vector.multi_reduction <minsi>, %29, %cst_18 [1] : vector<8x128xi32> to vector<8xi32>
    %31 = vector.shape_cast %30 : vector<8xi32> to vector<8x1xi32>
    %c0_19 = arith.constant 0 : index
    %c0_20 = arith.constant 0 : index
    %32 = vector.load %arg8[%c0_19, %c0_20] : memref<8x1xi32, #tpu.memory_space<vmem>>, vector<8x1xi32>
    %c0_i32 = arith.constant 0 : i32
    %33 = vector.broadcast %c0_i32 : i32 to vector<8x1xi32>
    %34 = arith.cmpi slt, %32, %33 : vector<8x1xi32>
    %35 = arith.select %34, %31, %32 : vector<8x1xi1>, vector<8x1xi32>
    %c4_i32 = arith.constant 4 : i32
    %36 = vector.broadcast %c4_i32 : i32 to vector<8x128xi32>
    %37 = arith.cmpi eq, %23, %36 : vector<8x128xi32>
    %38 = arith.sitofp %31 : vector<8x1xi32> to vector<8x1xf32>
    %c5_i32 = arith.constant 5 : i32
    %39 = vector.broadcast %c5_i32 : i32 to vector<8x128xi32>
    %40 = arith.cmpi eq, %23, %39 : vector<8x128xi32>
    %41 = arith.sitofp %35 : vector<8x1xi32> to vector<8x1xf32>
    %42 = vector.shape_cast %41 : vector<8x1xf32> to vector<8x1xf32>
    %43 = vector.broadcast %42 : vector<8x1xf32> to vector<8x128xf32>
    %44 = arith.select %40, %43, %22 : vector<8x128xi1>, vector<8x128xf32>
    %45 = vector.shape_cast %38 : vector<8x1xf32> to vector<8x1xf32>
    %46 = vector.broadcast %45 : vector<8x1xf32> to vector<8x128xf32>
    %47 = arith.select %37, %46, %44 : vector<8x128xi1>, vector<8x128xf32>
    %48 = arith.truncf %47 : vector<8x128xf32> to vector<8x128xbf16>
    %c0_21 = arith.constant 0 : index
    %c0_22 = arith.constant 0 : index
    %49 = vector.load %arg9[%c0_21, %c0_22] : memref<8x128xbf16, #tpu.memory_space<vmem>>, vector<8x128xbf16>
    tpu.vector_store %arg9[%c0_21, %c0_22], %48 {strides = array<i32>} : memref<8x128xbf16, #tpu.memory_space<vmem>>, vector<8x128xbf16>,
    return
  }
  func.func @transform_0(%arg0: i32) -> (i32, i32) {
    %c0_i32 = arith.constant 0 : i32
    %c0_i32_0 = arith.constant 0 : i32
    return %arg0, %c0_i32 : i32, i32
  }
  func.func @transform_1(%arg0: i32) -> (i32, i32) {
    %c0_i32 = arith.constant 0 : i32
    %c0_i32_0 = arith.constant 0 : i32
    %c0_i32_1 = arith.constant 0 : i32
    return %c0_i32, %c0_i32_0 : i32, i32
  }
  func.func @transform_2(%arg0: i32) -> (i32, i32) {
    %c0_i32 = arith.constant 0 : i32
    %c0_i32_0 = arith.constant 0 : i32
    %c0_i32_1 = arith.constant 0 : i32
    return %c0_i32, %c0_i32_0 : i32, i32
  }
  func.func @transform_3(%arg0: i32) -> (i32, i32) {
    %c0_i32 = arith.constant 0 : i32
    %c0_i32_0 = arith.constant 0 : i32
    %c0_i32_1 = arith.constant 0 : i32
    return %c0_i32, %c0_i32_0 : i32, i32
  }
  func.func @transform_4(%arg0: i32) -> (i32, i32) {
    %c0_i32 = arith.constant 0 : i32
    %c0_i32_0 = arith.constant 0 : i32
    %c0_i32_1 = arith.constant 0 : i32
    return %c0_i32, %c0_i32_0 : i32, i32
  }
  func.func @transform_5(%arg0: i32) -> (i32, i32) {
    %c0_i32 = arith.constant 0 : i32
    %c0_i32_0 = arith.constant 0 : i32
    %c0_i32_1 = arith.constant 0 : i32
    return %c0_i32, %c0_i32_0 : i32, i32
  }
  func.func @transform_6(%arg0: i32) -> (i32, i32) {
    %c0_i32 = arith.constant 0 : i32
    %c0_i32_0 = arith.constant 0 : i32
    %c0_i32_1 = arith.constant 0 : i32
    return %c0_i32, %c0_i32_0 : i32, i32
  }
  func.func @transform_7(%arg0: i32) -> (i32, i32) {
    %c0_i32 = arith.constant 0 : i32
    %c0_i32_0 = arith.constant 0 : i32
    return %arg0, %c0_i32 : i32, i32
  }
  func.func @transform_8(%arg0: i32) -> (i32, i32) {
    %c0_i32 = arith.constant 0 : i32
    %c0_i32_0 = arith.constant 0 : i32
    return %arg0, %c0_i32 : i32, i32
  }
}

</mosaic_0001>

<llo_original>
// kernel: _ddqn_act.3
$region0: #{_ddqn_act.3}
  #allocation0 [shape = 'u32[]', space=smem, size = 0x4, offset = 0x4, fixed_abs, tag = 'smem constant byte address 0x4 - core index']
  #allocation1 [shape = 'u32[144,128]{1,0:T(1,128)}', space=vmem, size = 0x12000, scoped, tag = 'internal scratch']
  %s0 = inlined_call_operand.vmem [shape: f32[8,16], index: 0, kind: input, shape index: {}]
  %s1 = inlined_call_operand.vmem [shape: bf16[16,128], index: 1, kind: input, shape index: {}]
  %s2 = inlined_call_operand.vmem [shape: f32[1,128], index: 2, kind: input, shape index: {}]
  %s3 = inlined_call_operand.vmem [shape: bf16[128,128], index: 3, kind: input, shape index: {}]
  %s4 = inlined_call_operand.vmem [shape: f32[1,128], index: 4, kind: input, shape index: {}]
  %s5 = inlined_call_operand.vmem [shape: bf16[128,128], index: 5, kind: input, shape index: {}]
  %s6 = inlined_call_operand.vmem [shape: f32[1,128], index: 6, kind: input, shape index: {}]
  %s7 = inlined_call_operand.vmem [shape: s32[8,1], index: 7, kind: input, shape index: {}]
  %s8 = inlined_call_operand.vmem [shape: bf16[8,128], index: 8, kind: output, shape index: {}]
  %s9 = sld [smem:[#allocation0]]
  $region42: #{_ddqn_act.3} parent=0
    _
  %s11 = ssub.s32 1, %s9
  %s12 = scalar_select 0, %s11, %s9
  // Predicated region
  $region2: #{_ddqn_act.3} parent=0 // pred_check
    _
  $region3: #{_ddqn_act.3} parent=0 // pred_check_branch
    %14 = sbr.rel (0) target = $region5
  $region4: #{_ddqn_act.3} parent=0 // pred_region
    _
  $region5: #{_ddqn_act.3} parent=0 // pred_fallthru
    _
  // Predicated region
  $region6: #{_ddqn_act.3} parent=0 // pred_check
    _
  $region7: #{_ddqn_act.3} parent=0 // pred_check_branch
    %16 = sbr.rel (0) target = $region9
  $region8: #{_ddqn_act.3} parent=0 // pred_region
    _
  $region9: #{_ddqn_act.3} parent=0 // pred_fallthru
    _
  // Predicated region
  $region10: #{_ddqn_act.3} parent=0 // pred_check
    _
  $region11: #{_ddqn_act.3} parent=0 // pred_check_branch
    %18 = sbr.rel (0) target = $region13
  $region12: #{_ddqn_act.3} parent=0 // pred_region
    _
  $region13: #{_ddqn_act.3} parent=0 // pred_fallthru
    _
  // Predicated region
  $region14: #{_ddqn_act.3} parent=0 // pred_check
    _
  $region15: #{_ddqn_act.3} parent=0 // pred_check_branch
    %20 = sbr.rel (0) target = $region17
  $region16: #{_ddqn_act.3} parent=0 // pred_region
    _
  $region17: #{_ddqn_act.3} parent=0 // pred_fallthru
    _
  // Predicated region
  $region18: #{_ddqn_act.3} parent=0 // pred_check
    _
  $region19: #{_ddqn_act.3} parent=0 // pred_check_branch
    %22 = sbr.rel (0) target = $region21
  $region20: #{_ddqn_act.3} parent=0 // pred_region
    _
  $region21: #{_ddqn_act.3} parent=0 // pred_fallthru
    _
  // Predicated region
  $region22: #{_ddqn_act.3} parent=0 // pred_check
    _
  $region23: #{_ddqn_act.3} parent=0 // pred_check_branch
    %24 = sbr.rel (0) target = $region25
  $region24: #{_ddqn_act.3} parent=0 // pred_region
    _
  $region25: #{_ddqn_act.3} parent=0 // pred_fallthru
    _
  // Predicated region
  $region26: #{_ddqn_act.3} parent=0 // pred_check
    _
  $region27: #{_ddqn_act.3} parent=0 // pred_check_branch
    %26 = sbr.rel (0) target = $region29
  $region28: #{_ddqn_act.3} parent=0 // pred_region
    _
  $region29: #{_ddqn_act.3} parent=0 // pred_fallthru
    _
  // Predicated region
  $region30: #{_ddqn_act.3} parent=0 // pred_check
    _
  $region31: #{_ddqn_act.3} parent=0 // pred_check_branch
    %28 = sbr.rel (0) target = $region33
  $region32: #{_ddqn_act.3} parent=0 // pred_region
    _
  $region33: #{_ddqn_act.3} parent=0 // pred_fallthru
    _
  %v30 = vld [vmem:[%s0] sm:$0xff]
  %v31 = vpack.c.bf16 %v30, %v30
  %v32 = vld [vmem:[%s1] sm:$0xf]
  %v33 = vld [vmem:[%s1 + $0x4] sm:$0xf]
  %v34 = vld [vmem:[%s2] sm:$0x1]
  %v36 = vlaneseq
  %v37 = vshrl.u32 %v36, 7
  %v38 = vsub.s32 0, %v37
  %v39 = vrot.slane %v34, %v38
  %v43 = vunpack.c.l.b16 %v32
  %v44 = vunpack.c.l.b16 %v33
  %v45 = vpack.c.b16 %v44, %v43
  %vm47 = vcmask 130048
  %v49 = vsel %vm47, %v31, 0
  %51 = vmatprep.subr.bf16.mxu0 0
  %52 = vmatpush1.bf16.msra.mxu0 %v45
  %53 = vmatprep.subr.bf16.mxu0 0
  %54 = vmatpush1.bf16.msra.mxu0 0
  %55 = vmatprep.subr.bf16.mxu0 0
  %56 = vmatpush1.bf16.msra.mxu0 0
  %57 = vmatprep.subr.bf16.mxu0 0
  %58 = vmatpush1.bf16.msra.mxu0 0
  %59 = vmatprep.subr.bf16.mxu0 0
  %60 = vmatpush1.bf16.msra.mxu0 0
  %61 = vmatprep.subr.bf16.mxu0 0
  %62 = vmatpush1.bf16.msra.mxu0 0
  %63 = vmatprep.subr.bf16.mxu0 0
  %64 = vmatpush1.bf16.msra.mxu0 0
  %65 = vmatprep.subr.bf16.mxu0 0
  %66 = vmatpush1.bf16.msra.mxu0 0
  %67 = vmatprep.subr.bf16.mxu0 0
  %68 = vmatpush1.bf16.msra.mxu0 0
  %69 = vmatprep.subr.bf16.mxu0 0
  %70 = vmatpush1.bf16.msra.mxu0 0
  %71 = vmatprep.subr.bf16.mxu0 0
  %72 = vmatpush1.bf16.msra.mxu0 0
  %73 = vmatprep.subr.bf16.mxu0 0
  %74 = vmatpush1.bf16.msra.mxu0 0
  %75 = vmatprep.subr.bf16.mxu0 0
  %76 = vmatpush1.bf16.msra.mxu0 0
  %77 = vmatprep.subr.bf16.mxu0 0
  %78 = vmatpush1.bf16.msra.mxu0 0
  %79 = vmatprep.subr.bf16.mxu0 0
  %80 = vmatpush1.bf16.msra.mxu0 0
  %81 = vmatprep.subr.bf16.mxu0 0
  %82 = vmatpush1.bf16.msra.mxu0 0
  %83 = vmatprep.mubr.bf16.mxu0 0
  %84 = vmatmul.mubr.bf16.gmra.mrb[0].mxu0 %v49
  %v85 = vpop.f32.mrb[0].mxu0
  %v86 = vadd.f32 %v39, %v85
  %v87 = vpop.f32.mrb[0].mxu0
  %v88 = vpop.f32.mrb[0].mxu0
  %v89 = vpop.f32.mrb[0].mxu0
  %90 = vdwg.mxu0
  %v91 = vmax.f32 %v86, 0.0
  %v92 = vpack.c.bf16 %v91, %v91
  %v93 = vld [vmem:[%s3] sm:$0xf]
  %v94 = vld [vmem:[%s3 + $0x4] sm:$0xf]
  %v95 = vld [vmem:[%s3 + $0x8] sm:$0xf]
  %v96 = vld [vmem:[%s3 + $0xc] sm:$0xf]
  %v97 = vld [vmem:[%s3 + $0x10] sm:$0xf]
  %v98 = vld [vmem:[%s3 + $0x14] sm:$0xf]
  %v99 = vld [vmem:[%s3 + $0x18] sm:$0xf]
  %v100 = vld [vmem:[%s3 + $0x1c] sm:$0xf]
  %v101 = vld [vmem:[%s3 + $0x20] sm:$0xf]
  %v102 = vld [vmem:[%s3 + $0x24] sm:$0xf]
  %v103 = vld [vmem:[%s3 + $0x28] sm:$0xf]
  %v104 = vld [vmem:[%s3 + $0x2c] sm:$0xf]
  %v105 = vld [vmem:[%s3 + $0x30] sm:$0xf]
  %v106 = vld [vmem:[%s3 + $0x34] sm:$0xf]
  %v107 = vld [vmem:[%s3 + $0x38] sm:$0xf]
  %v108 = vld [vmem:[%s3 + $0x3c] sm:$0xf]
  %v109 = vld [vmem:[%s4] sm:$0x1]
  %v111 = vlaneseq
  %v112 = vshrl.u32 %v111, 7
  %v113 = vsub.s32 0, %v112
  %v114 = vrot.slane %v109, %v113
  %v132 = vunpack.c.l.b16 %v93
  %v133 = vunpack.c.l.b16 %v94
  %v134 = vunpack.c.l.b16 %v95
  %v135 = vunpack.c.l.b16 %v96
  %v136 = vunpack.c.l.b16 %v97
  %v137 = vunpack.c.l.b16 %v98
  %v138 = vunpack.c.l.b16 %v99
  %v139 = vunpack.c.l.b16 %v100
  %v140 = vunpack.c.l.b16 %v101
  %v141 = vunpack.c.l.b16 %v102
  %v142 = vunpack.c.l.b16 %v103
  %v143 = vunpack.c.l.b16 %v104
  %v144 = vunpack.c.l.b16 %v105
  %v145 = vunpack.c.l.b16 %v106
  %v146 = vunpack.c.l.b16 %v107
  %v147 = vunpack.c.l.b16 %v108
  %v148 = vpack.c.b16 %v133, %v132
  %v149 = vpack.c.b16 %v135, %v134
  %v150 = vpack.c.b16 %v137, %v136
  %v151 = vpack.c.b16 %v139, %v138
  %v152 = vpack.c.b16 %v141, %v140
  %v153 = vpack.c.b16 %v143, %v142
  %v154 = vpack.c.b16 %v145, %v144
  %v155 = vpack.c.b16 %v147, %v146
  %164 = vmatprep.subr.bf16.mxu0 0
  %165 = vmatpush1.bf16.msra.mxu0 %v148
  %166 = vmatprep.subr.bf16.mxu0 0
  %167 = vmatpush1.bf16.msra.mxu0 %v149
  %168 = vmatprep.subr.bf16.mxu0 0
  %169 = vmatpush1.bf16.msra.mxu0 %v150
  %170 = vmatprep.subr.bf16.mxu0 0
  %171 = vmatpush1.bf16.msra.mxu0 %v151
  %172 = vmatprep.subr.bf16.mxu0 0
  %173 = vmatpush1.bf16.msra.mxu0 %v152
  %174 = vmatprep.subr.bf16.mxu0 0
  %175 = vmatpush1.bf16.msra.mxu0 %v153
  %176 = vmatprep.subr.bf16.mxu0 0
  %177 = vmatpush1.bf16.msra.mxu0 %v154
  %178 = vmatprep.subr.bf16.mxu0 0
  %179 = vmatpush1.bf16.msra.mxu0 %v155
  %180 = vmatprep.subr.bf16.mxu0 0
  %181 = vmatpush1.bf16.msra.mxu0 0
  %182 = vmatprep.subr.bf16.mxu0 0
  %183 = vmatpush1.bf16.msra.mxu0 0
  %184 = vmatprep.subr.bf16.mxu0 0
  %185 = vmatpush1.bf16.msra.mxu0 0
  %186 = vmatprep.subr.bf16.mxu0 0
  %187 = vmatpush1.bf16.msra.mxu0 0
  %188 = vmatprep.subr.bf16.mxu0 0
  %189 = vmatpush1.bf16.msra.mxu0 0
  %190 = vmatprep.subr.bf16.mxu0 0
  %191 = vmatpush1.bf16.msra.mxu0 0
  %192 = vmatprep.subr.bf16.mxu0 0
  %193 = vmatpush1.bf16.msra.mxu0 0
  %194 = vmatprep.subr.bf16.mxu0 0
  %195 = vmatpush1.bf16.msra.mxu0 0
  %196 = vmatprep.mubr.bf16.mxu0 0
  %197 = vmatmul.mubr.bf16.gmra.mrb[0].mxu0 %v92
  %v198 = vpop.f32.mrb[0].mxu0
  %v199 = vadd.f32 %v114, %v198
  %v200 = vpop.f32.mrb[0].mxu0
  %v201 = vpop.f32.mrb[0].mxu0
  %v202 = vpop.f32.mrb[0].mxu0
  %203 = vdwg.mxu0
  %v204 = vmax.f32 %v199, 0.0
  %v205 = vpack.c.bf16 %v204, %v204
  %v206 = vld [vmem:[%s5] sm:$0xf]
  %v207 = vld [vmem:[%s5 + $0x4] sm:$0xf]
  %v208 = vld [vmem:[%s5 + $0x8] sm:$0xf]
  %v209 = vld [vmem:[%s5 + $0xc] sm:$0xf]
  %v210 = vld [vmem:[%s5 + $0x10] sm:$0xf]
  %v211 = vld [vmem:[%s5 + $0x14] sm:$0xf]
  %v212 = vld [vmem:[%s5 + $0x18] sm:$0xf]
  %v213 = vld [vmem:[%s5 + $0x1c] sm:$0xf]
  %v214 = vld [vmem:[%s5 + $0x20] sm:$0xf]
  %v215 = vld [vmem:[%s5 + $0x24] sm:$0xf]
  %v216 = vld [vmem:[%s5 + $0x28] sm:$0xf]
  %v217 = vld [vmem:[%s5 + $0x2c] sm:$0xf]
  %v218 = vld [vmem:[%s5 + $0x30] sm:$0xf]
  %v219 = vld [vmem:[%s5 + $0x34] sm:$0xf]
  %v220 = vld [vmem:[%s5 + $0x38] sm:$0xf]
  %v221 = vld [vmem:[%s5 + $0x3c] sm:$0xf]
  %v222 = vld [vmem:[%s6] sm:$0x1]
  %v224 = vlaneseq
  %v225 = vshrl.u32 %v224, 7
  %v226 = vsub.s32 0, %v225
  %v227 = vrot.slane %v222, %v226
  %v245 = vunpack.c.l.b16 %v206
  %v246 = vunpack.c.l.b16 %v207
  %v247 = vunpack.c.l.b16 %v208
  %v248 = vunpack.c.l.b16 %v209
  %v249 = vunpack.c.l.b16 %v210
  %v250 = vunpack.c.l.b16 %v211
  %v251 = vunpack.c.l.b16 %v212
  %v252 = vunpack.c.l.b16 %v213
  %v253 = vunpack.c.l.b16 %v214
  %v254 = vunpack.c.l.b16 %v215
  %v255 = vunpack.c.l.b16 %v216
  %v256 = vunpack.c.l.b16 %v217
  %v257 = vunpack.c.l.b16 %v218
  %v258 = vunpack.c.l.b16 %v219
  %v259 = vunpack.c.l.b16 %v220
  %v260 = vunpack.c.l.b16 %v221
  %v261 = vpack.c.b16 %v246, %v245
  %v262 = vpack.c.b16 %v248, %v247
  %v263 = vpack.c.b16 %v250, %v249
  %v264 = vpack.c.b16 %v252, %v251
  %v265 = vpack.c.b16 %v254, %v253
  %v266 = vpack.c.b16 %v256, %v255
  %v267 = vpack.c.b16 %v258, %v257
  %v268 = vpack.c.b16 %v260, %v259
  %277 = vmatprep.subr.bf16.mxu0 0
  %278 = vmatpush1.bf16.msra.mxu0 %v261
  %279 = vmatprep.subr.bf16.mxu0 0
  %280 = vmatpush1.bf16.msra.mxu0 %v262
  %281 = vmatprep.subr.bf16.mxu0 0
  %282 = vmatpush1.bf16.msra.mxu0 %v263
  %283 = vmatprep.subr.bf16.mxu0 0
  %284 = vmatpush1.bf16.msra.mxu0 %v264
  %285 = vmatprep.subr.bf16.mxu0 0
  %286 = vmatpush1.bf16.msra.mxu0 %v265
  %287 = vmatprep.subr.bf16.mxu0 0
  %288 = vmatpush1.bf16.msra.mxu0 %v266
  %289 = vmatprep.subr.bf16.mxu0 0
  %290 = vmatpush1.bf16.msra.mxu0 %v267
  %291 = vmatprep.subr.bf16.mxu0 0
  %292 = vmatpush1.bf16.msra.mxu0 %v268
  %293 = vmatprep.subr.bf16.mxu0 0
  %294 = vmatpush1.bf16.msra.mxu0 0
  %295 = vmatprep.subr.bf16.mxu0 0
  %296 = vmatpush1.bf16.msra.mxu0 0
  %297 = vmatprep.subr.bf16.mxu0 0
  %298 = vmatpush1.bf16.msra.mxu0 0
  %299 = vmatprep.subr.bf16.mxu0 0
  %300 = vmatpush1.bf16.msra.mxu0 0
  %301 = vmatprep.subr.bf16.mxu0 0
  %302 = vmatpush1.bf16.msra.mxu0 0
  %303 = vmatprep.subr.bf16.mxu0 0
  %304 = vmatpush1.bf16.msra.mxu0 0
  %305 = vmatprep.subr.bf16.mxu0 0
  %306 = vmatpush1.bf16.msra.mxu0 0
  %307 = vmatprep.subr.bf16.mxu0 0
  %308 = vmatpush1.bf16.msra.mxu0 0
  %309 = vmatprep.mubr.bf16.mxu0 0
  %310 = vmatmul.mubr.bf16.gmra.mrb[0].mxu0 %v205
  %v311 = vpop.f32.mrb[0].mxu0
  %v312 = vadd.f32 %v227, %v311
  %v313 = vpop.f32.mrb[0].mxu0
  %v314 = vpop.f32.mrb[0].mxu0
  %v315 = vpop.f32.mrb[0].mxu0
  %316 = vdwg.mxu0
  %v317 = vlaneseq
  %v318 = vand.u32 %v317, 127
  %319 = vmax.xlane.f32.xlu0 %v312
  %v320 = vpop.xlane.xlu0 %319
  %vm321 = vcmp.eq.f32.partialorder %v312, %v320
  %v322 = vsel %vm321, %v318, 128
  %v323 = vand.u32 %v322, 65535
  %v324 = vshra.s32 %v322, 16
  %v325 = vcvt.s32.f32 %v323
  %v326 = vcvt.s32.f32 %v324
  %327 = vmin.xlane.f32.xlu0 %v326
  %v328 = vpop.xlane.xlu0 %327
  %vm329 = vcmp.eq.f32.partialorder %v326, %v328
  %v330 = vsel %vm329, %v325, inf
  %331 = vmin.xlane.f32.xlu0 %v330
  %v332 = vpop.xlane.xlu0 %331
  %v333 = vcvt.f32.s32 %v332
  %v334 = vcvt.f32.s32 %v328
  %v335 = vshll.u32 %v334, 16
  %v336 = vadd.s32 %v335, %v333
  %v337 = vld [vmem:[%s7] sm:$0xff]
  %vm338 = vcmp.lt.s32.totalorder %v337, 0
  %v339 = vsel %vm338, %v336, %v337
  %vm340 = vcmp.eq.s32.totalorder %v318, 4
  %v341 = vcvt.s32.f32 %v336
  %vm342 = vcmp.eq.s32.totalorder %v318, 5
  %v343 = vcvt.s32.f32 %v339
  %345 = vset.pattern.permute.xlu0 0
  %346 = vperm.xlu0 %345, %v343
  %v347 = vpop.permute.xlu0 %346
  %v349 = vsel %vm342, %v347, %v312
  %v350 = vsel %vm340, %v341, %v349
  %v351 = vpack.c.bf16 %v350, %v350
  %352 = vst [vmem:[%s8] sm:$0xf] %v351
  // Predicated region
  $region34: #{_ddqn_act.3} parent=0 // pred_check
    _
  $region35: #{_ddqn_act.3} parent=0 // pred_check_branch
    %354 = sbr.rel (0) target = $region37
  $region36: #{_ddqn_act.3} parent=0 // pred_region
    _
  $region37: #{_ddqn_act.3} parent=0 // pred_fallthru
    _
  // Predicated region
  $region38: #{_ddqn_act.3} parent=0 // pred_check
    _
  $region39: #{_ddqn_act.3} parent=0 // pred_check_branch
    %356 = sbr.rel (0) target = $region41
  $region40: #{_ddqn_act.3} parent=0 // pred_region
    _
  $region41: #{_ddqn_act.3} parent=0 // pred_fallthru
    _

</llo_original>
